<compile_context>
chip_gen: v7x
topology: tpu7x:2x2x1
jax: 0.10.0
libtpu: 0.0.40
codegen_flags: <defaults>
</compile_context>

<pallas_src>
import jax
import jax.numpy as jnp
from jax import lax
from jax.experimental import pallas as pl
from jax.experimental.pallas import tpu as pltpu


def _round_up(n: int, m: int) -> int:
    return ((n + m - 1) // m) * m


def _pad2(a, rows: int, cols: int):
    a = a.astype(jnp.float32)
    return jnp.pad(a, ((0, rows - a.shape[0]), (0, cols - a.shape[1])))


def _mlp_kernel(inv_norm_ref, x_ref, w1_ref, b1_ref, w2_ref, b2_ref,
                w3_ref, b3_ref, o_ref):
    # Scale this batch tile by the precomputed global 1/||x||_2 (one VPU mul).
    x = x_ref[...] * inv_norm_ref[0]

    # layer1: Linear + ReLU (MXU, f32 accumulation)
    h1 = jnp.dot(x, w1_ref[...], preferred_element_type=jnp.float32) + b1_ref[...]
    h1 = jnp.maximum(h1, 0.0)

    # layer2: Linear + ReLU
    h2 = jnp.dot(h1, w2_ref[...], preferred_element_type=jnp.float32) + b2_ref[...]
    h2 = jnp.maximum(h2, 0.0)

    # layer3: Linear (un-normalized y; global 1/||y|| applied in the wrapper)
    y = jnp.dot(h2, w3_ref[...], preferred_element_type=jnp.float32) + b3_ref[...]
    o_ref[...] = y.astype(o_ref.dtype)


def d2e_net_mse(x, w1, b1, w2, b2, w3, b3, *, tb=128):
    """x: [B, in_dim]; wK: [inK, outK]; bK: [1, outK]. Returns [B, out_dim] f32."""
    B, in_dim = x.shape
    h1_dim, h2_dim, out_dim = w1.shape[1], w2.shape[1], w3.shape[1]

    # Lane-dense padded feature sizes (multiples of 128).
    IN = _round_up(in_dim, 128)
    H1 = _round_up(h1_dim, 128)
    H2 = _round_up(h2_dim, 128)
    OUT = _round_up(out_dim, 128)

    # Batch tile: at least one f32 sublane group (8 rows), at most `tb` rows.
    TB = min(_round_up(tb, 8), _round_up(max(B, 1), 8))
    B_pad = _round_up(B, TB)
    num_tiles = B_pad // TB

    xf = x.astype(jnp.float32)
    # Global input norm (exact f32 rsqrt; matches x / ||x|| to <1e-6 rel).
    inv_x_norm = lax.rsqrt(jnp.sum(xf * xf)).reshape((1,))

    xp = _pad2(xf, B_pad, IN)
    w1p, b1p = _pad2(w1, IN, H1), _pad2(b1, 1, H1)
    w2p, b2p = _pad2(w2, H1, H2), _pad2(b2, 1, H2)
    w3p, b3p = _pad2(w3, H2, OUT), _pad2(b3, 1, OUT)

    # VMEM budget: double-buffered x/out tiles + resident weights + activations.
    weight_bytes = 4 * (IN * H1 + H1 * H2 + H2 * OUT + H1 + H2 + OUT)
    tile_bytes = 4 * TB * (IN + OUT + H1 + H2)
    vmem_limit = int(min(64 << 20, max(32 << 20, 2 * (2 * weight_bytes + 2 * tile_bytes))))

    def pinned(shape):
        return pl.BlockSpec(shape, lambda i: (0, 0))

    y_pad = pl.pallas_call(
        _mlp_kernel,
        out_shape=jax.ShapeDtypeStruct((B_pad, OUT), jnp.float32),
        grid=(num_tiles,),
        in_specs=[
            pl.BlockSpec(memory_space=pltpu.MemorySpace.SMEM),      # 1/||x|| scalar
            pl.BlockSpec((TB, IN), lambda i: (i, 0)),               # x tile
            pinned((IN, H1)), pinned((1, H1)),                      # layer1 (resident)
            pinned((H1, H2)), pinned((1, H2)),                      # layer2 (resident)
            pinned((H2, OUT)), pinned((1, OUT)),                    # layer3 (resident)
        ],
        out_specs=pl.BlockSpec((TB, OUT), lambda i: (i, 0)),        # lane-dense store
        compiler_params=pltpu.CompilerParams(
            dimension_semantics=("parallel",),                      # shard tiles across TCs
            vmem_limit_bytes=vmem_limit,
        ),
    )(inv_x_norm, xp, w1p, b1p, w2p, b2p, w3p, b3p)

    # Slice off batch/feature padding, then apply the global output norm.
    y = y_pad[:B, :out_dim]
    return y * lax.rsqrt(jnp.sum(y * y))


def init_params(key, in_dim, n_hidden_1, n_hidden_2, out_dim):
    """Deterministic PyTorch-Linear-style init: U(-1/sqrt(fan_in), 1/sqrt(fan_in))."""
    ks = jax.random.split(key, 6)

    def lin(kw, kb, fan_in, fan_out):
        bound = 1.0 / jnp.sqrt(fan_in)
        w = jax.random.uniform(kw, (fan_in, fan_out), jnp.float32, -bound, bound)
        b = jax.random.uniform(kb, (1, fan_out), jnp.float32, -bound, bound)
        return w, b

    w1, b1 = lin(ks[0], ks[1], in_dim, n_hidden_1)
    w2, b2 = lin(ks[2], ks[3], n_hidden_1, n_hidden_2)
    w3, b3 = lin(ks[4], ks[5], n_hidden_2, out_dim)
    return w1, b1, w2, b2, w3, b3


def reference(x, w1, b1, w2, b2, w3, b3):
    x = x / jnp.linalg.norm(x)
    x = jnp.maximum(x @ w1 + b1, 0.0)
    x = jnp.maximum(x @ w2 + b2, 0.0)
    x = x @ w3 + b3
    return x / jnp.linalg.norm(x)


if __name__ == "__main__":
    B, in_dim, n_hidden_1, n_hidden_2, out_dim = 2, 32, 64, 48, 16

    key = jax.random.PRNGKey(0)
    k_x, k_p = jax.random.split(key)
    x = jax.random.normal(k_x, (B, in_dim), dtype=jnp.float32)
    params = init_params(k_p, in_dim, n_hidden_1, n_hidden_2, out_dim)

    fn = jax.jit(d2e_net_mse)
    out = jax.block_until_ready(fn(x, *params))

    ref = reference(x, *params)
    assert out.shape == ref.shape, "shape mismatch vs JAX reference"
    assert jnp.allclose(out, ref, atol=1e-5, rtol=1e-5), "mismatch vs JAX reference"

    print("KERNEL_OK")
</pallas_src>

<mosaic_0001>
module attributes {stable_mosaic.version = 11 : i64} {
  func.func @_mlp_kernel(%arg0: i32, %arg1: memref<1xf32, #tpu.memory_space<smem>>, %arg2: memref<8x128xf32, #tpu.memory_space<vmem>>, %arg3: memref<128x128xf32, #tpu.memory_space<vmem>>, %arg4: memref<1x128xf32, #tpu.memory_space<vmem>>, %arg5: memref<128x128xf32, #tpu.memory_space<vmem>>, %arg6: memref<1x128xf32, #tpu.memory_space<vmem>>, %arg7: memref<128x128xf32, #tpu.memory_space<vmem>>, %arg8: memref<1x128xf32, #tpu.memory_space<vmem>>, %arg9: memref<8x128xf32, #tpu.memory_space<vmem>>) attributes {dimension_semantics = [#tpu.dimension_semantics<parallel>], iteration_bounds = array<i64: 1>, scalar_prefetch = 0 : i64, scratch_operands = 0 : i64, tpu.core_type = #tpu.core_type<tc>, window_params = [{transform_indices = @transform_0, window_bounds = array<i64: 1>}, {transform_indices = @transform_1, window_bounds = array<i64: 8, 128>}, {pipeline_mode = #tpu.pipeline_mode<synchronous>, transform_indices = @transform_2, window_bounds = array<i64: 128, 128>}, {pipeline_mode = #tpu.pipeline_mode<synchronous>, transform_indices = @transform_3, window_bounds = array<i64: 1, 128>}, {pipeline_mode = #tpu.pipeline_mode<synchronous>, transform_indices = @transform_4, window_bounds = array<i64: 128, 128>}, {pipeline_mode = #tpu.pipeline_mode<synchronous>, transform_indices = @transform_5, window_bounds = array<i64: 1, 128>}, {pipeline_mode = #tpu.pipeline_mode<synchronous>, transform_indices = @transform_6, window_bounds = array<i64: 128, 128>}, {pipeline_mode = #tpu.pipeline_mode<synchronous>, transform_indices = @transform_7, window_bounds = array<i64: 1, 128>}, {transform_indices = @transform_8, window_bounds = array<i64: 8, 128>}]} {
    %c0 = arith.constant 0 : index
    %c0_0 = arith.constant 0 : index
    %0 = vector.load %arg2[%c0, %c0_0] : memref<8x128xf32, #tpu.memory_space<vmem>>, vector<8x128xf32>
    %c0_1 = arith.constant 0 : index
    %1 = memref.load %arg1[%c0_1] : memref<1xf32, #tpu.memory_space<smem>>
    %2 = vector.broadcast %1 : f32 to vector<8x128xf32>
    %3 = arith.mulf %0, %2 : vector<8x128xf32>
    %c0_2 = arith.constant 0 : index
    %c0_3 = arith.constant 0 : index
    %4 = vector.load %arg3[%c0_2, %c0_3] : memref<128x128xf32, #tpu.memory_space<vmem>>, vector<128x128xf32>
    %cst = arith.constant dense<0.000000e+00> : vector<8x128xf32>
    %5 = tpu.matmul %3, %4, %cst {dimension_numbers = #tpu.dot_dimension_numbers<[1], [0], [0], [1], [0, 0, 1, 1], [], []>} : vector<8x128xf32>, vector<128x128xf32>, vector<8x128xf32> -> vector<8x128xf32>
    %c0_4 = arith.constant 0 : index
    %c0_5 = arith.constant 0 : index
    %6 = vector.load %arg4[%c0_4, %c0_5] : memref<1x128xf32, #tpu.memory_space<vmem>>, vector<1x128xf32>
    %7 = vector.broadcast %6 : vector<1x128xf32> to vector<8x128xf32>
    %8 = arith.addf %5, %7 : vector<8x128xf32>
    %cst_6 = arith.constant 0.000000e+00 : f32
    %9 = vector.broadcast %cst_6 : f32 to vector<8x128xf32>
    %10 = arith.maximumf %8, %9 : vector<8x128xf32>
    %c0_7 = arith.constant 0 : index
    %c0_8 = arith.constant 0 : index
    %11 = vector.load %arg5[%c0_7, %c0_8] : memref<128x128xf32, #tpu.memory_space<vmem>>, vector<128x128xf32>
    %cst_9 = arith.constant dense<0.000000e+00> : vector<8x128xf32>
    %12 = tpu.matmul %10, %11, %cst_9 {dimension_numbers = #tpu.dot_dimension_numbers<[1], [0], [0], [1], [0, 0, 1, 1], [], []>} : vector<8x128xf32>, vector<128x128xf32>, vector<8x128xf32> -> vector<8x128xf32>
    %c0_10 = arith.constant 0 : index
    %c0_11 = arith.constant 0 : index
    %13 = vector.load %arg6[%c0_10, %c0_11] : memref<1x128xf32, #tpu.memory_space<vmem>>, vector<1x128xf32>
    %14 = vector.broadcast %13 : vector<1x128xf32> to vector<8x128xf32>
    %15 = arith.addf %12, %14 : vector<8x128xf32>
    %cst_12 = arith.constant 0.000000e+00 : f32
    %16 = vector.broadcast %cst_12 : f32 to vector<8x128xf32>
    %17 = arith.maximumf %15, %16 : vector<8x128xf32>
    %c0_13 = arith.constant 0 : index
    %c0_14 = arith.constant 0 : index
    %18 = vector.load %arg7[%c0_13, %c0_14] : memref<128x128xf32, #tpu.memory_space<vmem>>, vector<128x128xf32>
    %cst_15 = arith.constant dense<0.000000e+00> : vector<8x128xf32>
    %19 = tpu.matmul %17, %18, %cst_15 {dimension_numbers = #tpu.dot_dimension_numbers<[1], [0], [0], [1], [0, 0, 1, 1], [], []>} : vector<8x128xf32>, vector<128x128xf32>, vector<8x128xf32> -> vector<8x128xf32>
    %c0_16 = arith.constant 0 : index
    %c0_17 = arith.constant 0 : index
    %20 = vector.load %arg8[%c0_16, %c0_17] : memref<1x128xf32, #tpu.memory_space<vmem>>, vector<1x128xf32>
    %21 = vector.broadcast %20 : vector<1x128xf32> to vector<8x128xf32>
    %22 = arith.addf %19, %21 : vector<8x128xf32>
    %c0_18 = arith.constant 0 : index
    %c0_19 = arith.constant 0 : index
    %23 = vector.load %arg9[%c0_18, %c0_19] : memref<8x128xf32, #tpu.memory_space<vmem>>, vector<8x128xf32>
    tpu.vector_store %arg9[%c0_18, %c0_19], %22 {strides = array<i32>} : memref<8x128xf32, #tpu.memory_space<vmem>>, vector<8x128xf32>,
    return
  }
  func.func @transform_0(%arg0: i32) -> i32 {
    %c0_i32 = arith.constant 0 : i32
    %c0_i32_0 = arith.constant 0 : i32
    return %c0_i32 : i32
  }
  func.func @transform_1(%arg0: i32) -> (i32, i32) {
    %c0_i32 = arith.constant 0 : i32
    %c0_i32_0 = arith.constant 0 : i32
    return %arg0, %c0_i32 : i32, i32
  }
  func.func @transform_2(%arg0: i32) -> (i32, i32) {
    %c0_i32 = arith.constant 0 : i32
    %c0_i32_0 = arith.constant 0 : i32
    %c0_i32_1 = arith.constant 0 : i32
    return %c0_i32, %c0_i32_0 : i32, i32
  }
  func.func @transform_3(%arg0: i32) -> (i32, i32) {
    %c0_i32 = arith.constant 0 : i32
    %c0_i32_0 = arith.constant 0 : i32
    %c0_i32_1 = arith.constant 0 : i32
    return %c0_i32, %c0_i32_0 : i32, i32
  }
  func.func @transform_4(%arg0: i32) -> (i32, i32) {
    %c0_i32 = arith.constant 0 : i32
    %c0_i32_0 = arith.constant 0 : i32
    %c0_i32_1 = arith.constant 0 : i32
    return %c0_i32, %c0_i32_0 : i32, i32
  }
  func.func @transform_5(%arg0: i32) -> (i32, i32) {
    %c0_i32 = arith.constant 0 : i32
    %c0_i32_0 = arith.constant 0 : i32
    %c0_i32_1 = arith.constant 0 : i32
    return %c0_i32, %c0_i32_0 : i32, i32
  }
  func.func @transform_6(%arg0: i32) -> (i32, i32) {
    %c0_i32 = arith.constant 0 : i32
    %c0_i32_0 = arith.constant 0 : i32
    %c0_i32_1 = arith.constant 0 : i32
    return %c0_i32, %c0_i32_0 : i32, i32
  }
  func.func @transform_7(%arg0: i32) -> (i32, i32) {
    %c0_i32 = arith.constant 0 : i32
    %c0_i32_0 = arith.constant 0 : i32
    %c0_i32_1 = arith.constant 0 : i32
    return %c0_i32, %c0_i32_0 : i32, i32
  }
  func.func @transform_8(%arg0: i32) -> (i32, i32) {
    %c0_i32 = arith.constant 0 : i32
    %c0_i32_0 = arith.constant 0 : i32
    return %arg0, %c0_i32 : i32, i32
  }
}

</mosaic_0001>

<llo_original>
// kernel: d2e_net_mse.1
$region0: #{d2e_net_mse.1}
  #allocation0 [shape = 'u32[]', space=smem, size = 0x4, offset = 0x4, fixed_abs, tag = 'smem constant byte address 0x4 - core index']
  #allocation1 [shape = 'u32[144,128]{1,0:T(1,128)}', space=vmem, size = 0x12000, scoped, tag = 'internal scratch']
  #allocation2 [shape = 'f32[1]{0:T(128)S(6)}', space=smem, size = 0x200, scoped, tag = 'scoped memory for d2e_net_mse.1']
  %s0 = inlined_call_operand.<no memory space> [shape: f32[1], index: 0, kind: input, shape index: {}]
  %s1 = inlined_call_operand.vmem [shape: f32[8,128], index: 1, kind: input, shape index: {}]
  %s2 = inlined_call_operand.vmem [shape: f32[128,128], index: 2, kind: input, shape index: {}]
  %s3 = inlined_call_operand.vmem [shape: f32[1,128], index: 3, kind: input, shape index: {}]
  %s4 = inlined_call_operand.vmem [shape: f32[128,128], index: 4, kind: input, shape index: {}]
  %s5 = inlined_call_operand.vmem [shape: f32[1,128], index: 5, kind: input, shape index: {}]
  %s6 = inlined_call_operand.vmem [shape: f32[128,128], index: 6, kind: input, shape index: {}]
  %s7 = inlined_call_operand.vmem [shape: f32[1,128], index: 7, kind: input, shape index: {}]
  %s8 = inlined_call_operand.vmem [shape: f32[8,128], index: 8, kind: output, shape index: {}]
  %s9 = sld [smem:[#allocation0]]
  $region42: #{d2e_net_mse.1} parent=0
    _
  %s11 = ssub.s32 1, %s9
  %s12 = scalar_select 0, %s11, %s9
  %13 = sst [smem:[#allocation2]] %s0
  // Predicated region
  $region2: #{d2e_net_mse.1} parent=0 // pred_check
    _
  $region3: #{d2e_net_mse.1} parent=0 // pred_check_branch
    %15 = sbr.rel (0) target = $region5
  $region4: #{d2e_net_mse.1} parent=0 // pred_region
    _
  $region5: #{d2e_net_mse.1} parent=0 // pred_fallthru
    _
  // Predicated region
  $region6: #{d2e_net_mse.1} parent=0 // pred_check
    _
  $region7: #{d2e_net_mse.1} parent=0 // pred_check_branch
    %17 = sbr.rel (0) target = $region9
  $region8: #{d2e_net_mse.1} parent=0 // pred_region
    _
  $region9: #{d2e_net_mse.1} parent=0 // pred_fallthru
    _
  // Predicated region
  $region10: #{d2e_net_mse.1} parent=0 // pred_check
    _
  $region11: #{d2e_net_mse.1} parent=0 // pred_check_branch
    %19 = sbr.rel (0) target = $region13
  $region12: #{d2e_net_mse.1} parent=0 // pred_region
    _
  $region13: #{d2e_net_mse.1} parent=0 // pred_fallthru
    _
  // Predicated region
  $region14: #{d2e_net_mse.1} parent=0 // pred_check
    _
  $region15: #{d2e_net_mse.1} parent=0 // pred_check_branch
    %21 = sbr.rel (0) target = $region17
  $region16: #{d2e_net_mse.1} parent=0 // pred_region
    _
  $region17: #{d2e_net_mse.1} parent=0 // pred_fallthru
    _
  // Predicated region
  $region18: #{d2e_net_mse.1} parent=0 // pred_check
    _
  $region19: #{d2e_net_mse.1} parent=0 // pred_check_branch
    %23 = sbr.rel (0) target = $region21
  $region20: #{d2e_net_mse.1} parent=0 // pred_region
    _
  $region21: #{d2e_net_mse.1} parent=0 // pred_fallthru
    _
  // Predicated region
  $region22: #{d2e_net_mse.1} parent=0 // pred_check
    _
  $region23: #{d2e_net_mse.1} parent=0 // pred_check_branch
    %25 = sbr.rel (0) target = $region25
  $region24: #{d2e_net_mse.1} parent=0 // pred_region
    _
  $region25: #{d2e_net_mse.1} parent=0 // pred_fallthru
    _
  // Predicated region
  $region26: #{d2e_net_mse.1} parent=0 // pred_check
    _
  $region27: #{d2e_net_mse.1} parent=0 // pred_check_branch
    %27 = sbr.rel (0) target = $region29
  $region28: #{d2e_net_mse.1} parent=0 // pred_region
    _
  $region29: #{d2e_net_mse.1} parent=0 // pred_fallthru
    _
  // Predicated region
  $region30: #{d2e_net_mse.1} parent=0 // pred_check
    _
  $region31: #{d2e_net_mse.1} parent=0 // pred_check_branch
    %29 = sbr.rel (0) target = $region33
  $region32: #{d2e_net_mse.1} parent=0 // pred_region
    _
  $region33: #{d2e_net_mse.1} parent=0 // pred_fallthru
    _
  %v30 = vld [vmem:[%s1] sm:$0xff]
  %s31 = sld [smem:[#allocation2]]
  %v32 = vstv %s31
  %v33 = vmul.f32 %v30, %v32
  %v34 = vld [vmem:[%s2] sm:$0xff]
  %v35 = vld [vmem:[%s2 + $0x8] sm:$0xff]
  %v36 = vld [vmem:[%s2 + $0x10] sm:$0xff]
  %v37 = vld [vmem:[%s2 + $0x18] sm:$0xff]
  %v38 = vld [vmem:[%s2 + $0x20] sm:$0xff]
  %v39 = vld [vmem:[%s2 + $0x28] sm:$0xff]
  %v40 = vld [vmem:[%s2 + $0x30] sm:$0xff]
  %v41 = vld [vmem:[%s2 + $0x38] sm:$0xff]
  %v42 = vld [vmem:[%s2 + $0x40] sm:$0xff]
  %v43 = vld [vmem:[%s2 + $0x48] sm:$0xff]
  %v44 = vld [vmem:[%s2 + $0x50] sm:$0xff]
  %v45 = vld [vmem:[%s2 + $0x58] sm:$0xff]
  %v46 = vld [vmem:[%s2 + $0x60] sm:$0xff]
  %v47 = vld [vmem:[%s2 + $0x68] sm:$0xff]
  %v48 = vld [vmem:[%s2 + $0x70] sm:$0xff]
  %v49 = vld [vmem:[%s2 + $0x78] sm:$0xff]
  %v50 = vld [vmem:[%s3] sm:$0x1]
  %v52 = vlaneseq
  %v53 = vshrl.u32 %v52, 7
  %v54 = vsub.s32 0, %v53
  %v55 = vrot.slane %v50, %v54
  %57 = vmatprep.subr.mxu0 0.0
  %58 = vmatpush1.msra.mxu0 %v34
  %59 = vmatprep.subr.mxu0 0.0
  %60 = vmatpush1.msra.mxu0 %v35
  %61 = vmatprep.subr.mxu0 0.0
  %62 = vmatpush1.msra.mxu0 %v36
  %63 = vmatprep.subr.mxu0 0.0
  %64 = vmatpush1.msra.mxu0 %v37
  %65 = vmatprep.subr.mxu0 0.0
  %66 = vmatpush1.msra.mxu0 %v38
  %67 = vmatprep.subr.mxu0 0.0
  %68 = vmatpush1.msra.mxu0 %v39
  %69 = vmatprep.subr.mxu0 0.0
  %70 = vmatpush1.msra.mxu0 %v40
  %71 = vmatprep.subr.mxu0 0.0
  %72 = vmatpush1.msra.mxu0 %v41
  %73 = vmatprep.subr.mxu0 0.0
  %74 = vmatpush1.msra.mxu0 %v42
  %75 = vmatprep.subr.mxu0 0.0
  %76 = vmatpush1.msra.mxu0 %v43
  %77 = vmatprep.subr.mxu0 0.0
  %78 = vmatpush1.msra.mxu0 %v44
  %79 = vmatprep.subr.mxu0 0.0
  %80 = vmatpush1.msra.mxu0 %v45
  %81 = vmatprep.subr.mxu0 0.0
  %82 = vmatpush1.msra.mxu0 %v46
  %83 = vmatprep.subr.mxu0 0.0
  %84 = vmatpush1.msra.mxu0 %v47
  %85 = vmatprep.subr.mxu0 0.0
  %86 = vmatpush1.msra.mxu0 %v48
  %87 = vmatprep.subr.mxu0 0.0
  %88 = vmatpush1.msra.mxu0 %v49
  %89 = vmatprep.subr.mxu0 0.0
  %90 = vmatpush1.msra.mxu0 0.0
  %91 = vmatprep.subr.mxu0 0.0
  %92 = vmatpush1.msra.mxu0 0.0
  %93 = vmatprep.subr.mxu0 0.0
  %94 = vmatpush1.msra.mxu0 0.0
  %95 = vmatprep.subr.mxu0 0.0
  %96 = vmatpush1.msra.mxu0 0.0
  %97 = vmatprep.subr.mxu0 0.0
  %98 = vmatpush1.msra.mxu0 0.0
  %99 = vmatprep.subr.mxu0 0.0
  %100 = vmatpush1.msra.mxu0 0.0
  %101 = vmatprep.subr.mxu0 0.0
  %102 = vmatpush1.msra.mxu0 0.0
  %103 = vmatprep.subr.mxu0 0.0
  %104 = vmatpush1.msra.mxu0 0.0
  %105 = vmatprep.subr.mxu0 0.0
  %106 = vmatpush1.msra.mxu0 0.0
  %107 = vmatprep.subr.mxu0 0.0
  %108 = vmatpush1.msra.mxu0 0.0
  %109 = vmatprep.subr.mxu0 0.0
  %110 = vmatpush1.msra.mxu0 0.0
  %111 = vmatprep.subr.mxu0 0.0
  %112 = vmatpush1.msra.mxu0 0.0
  %113 = vmatprep.subr.mxu0 0.0
  %114 = vmatpush1.msra.mxu0 0.0
  %115 = vmatprep.subr.mxu0 0.0
  %116 = vmatpush1.msra.mxu0 0.0
  %117 = vmatprep.subr.mxu0 0.0
  %118 = vmatpush1.msra.mxu0 0.0
  %119 = vmatprep.subr.mxu0 0.0
  %120 = vmatpush1.msra.mxu0 0.0
  %121 = vmatprep.mubr.f32.mxu0 0.0
  %122 = vmatmul.mubr.f32.gmra.mrb[0].mxu0 %v33
  %v123 = vpop.f32.mrb[0].mxu0
  %v124 = vadd.f32 %v55, %v123
  %v125 = vpop.f32.mrb[0].mxu0
  %126 = vdwg.mxu0
  %v127 = vmax.f32 %v124, 0.0
  %v128 = vld [vmem:[%s4] sm:$0xff]
  %v129 = vld [vmem:[%s4 + $0x8] sm:$0xff]
  %v130 = vld [vmem:[%s4 + $0x10] sm:$0xff]
  %v131 = vld [vmem:[%s4 + $0x18] sm:$0xff]
  %v132 = vld [vmem:[%s4 + $0x20] sm:$0xff]
  %v133 = vld [vmem:[%s4 + $0x28] sm:$0xff]
  %v134 = vld [vmem:[%s4 + $0x30] sm:$0xff]
  %v135 = vld [vmem:[%s4 + $0x38] sm:$0xff]
  %v136 = vld [vmem:[%s4 + $0x40] sm:$0xff]
  %v137 = vld [vmem:[%s4 + $0x48] sm:$0xff]
  %v138 = vld [vmem:[%s4 + $0x50] sm:$0xff]
  %v139 = vld [vmem:[%s4 + $0x58] sm:$0xff]
  %v140 = vld [vmem:[%s4 + $0x60] sm:$0xff]
  %v141 = vld [vmem:[%s4 + $0x68] sm:$0xff]
  %v142 = vld [vmem:[%s4 + $0x70] sm:$0xff]
  %v143 = vld [vmem:[%s4 + $0x78] sm:$0xff]
  %v144 = vld [vmem:[%s5] sm:$0x1]
  %v146 = vlaneseq
  %v147 = vshrl.u32 %v146, 7
  %v148 = vsub.s32 0, %v147
  %v149 = vrot.slane %v144, %v148
  %151 = vmatprep.subr.mxu0 0.0
  %152 = vmatpush1.msra.mxu0 %v128
  %153 = vmatprep.subr.mxu0 0.0
  %154 = vmatpush1.msra.mxu0 %v129
  %155 = vmatprep.subr.mxu0 0.0
  %156 = vmatpush1.msra.mxu0 %v130
  %157 = vmatprep.subr.mxu0 0.0
  %158 = vmatpush1.msra.mxu0 %v131
  %159 = vmatprep.subr.mxu0 0.0
  %160 = vmatpush1.msra.mxu0 %v132
  %161 = vmatprep.subr.mxu0 0.0
  %162 = vmatpush1.msra.mxu0 %v133
  %163 = vmatprep.subr.mxu0 0.0
  %164 = vmatpush1.msra.mxu0 %v134
  %165 = vmatprep.subr.mxu0 0.0
  %166 = vmatpush1.msra.mxu0 %v135
  %167 = vmatprep.subr.mxu0 0.0
  %168 = vmatpush1.msra.mxu0 %v136
  %169 = vmatprep.subr.mxu0 0.0
  %170 = vmatpush1.msra.mxu0 %v137
  %171 = vmatprep.subr.mxu0 0.0
  %172 = vmatpush1.msra.mxu0 %v138
  %173 = vmatprep.subr.mxu0 0.0
  %174 = vmatpush1.msra.mxu0 %v139
  %175 = vmatprep.subr.mxu0 0.0
  %176 = vmatpush1.msra.mxu0 %v140
  %177 = vmatprep.subr.mxu0 0.0
  %178 = vmatpush1.msra.mxu0 %v141
  %179 = vmatprep.subr.mxu0 0.0
  %180 = vmatpush1.msra.mxu0 %v142
  %181 = vmatprep.subr.mxu0 0.0
  %182 = vmatpush1.msra.mxu0 %v143
  %183 = vmatprep.subr.mxu0 0.0
  %184 = vmatpush1.msra.mxu0 0.0
  %185 = vmatprep.subr.mxu0 0.0
  %186 = vmatpush1.msra.mxu0 0.0
  %187 = vmatprep.subr.mxu0 0.0
  %188 = vmatpush1.msra.mxu0 0.0
  %189 = vmatprep.subr.mxu0 0.0
  %190 = vmatpush1.msra.mxu0 0.0
  %191 = vmatprep.subr.mxu0 0.0
  %192 = vmatpush1.msra.mxu0 0.0
  %193 = vmatprep.subr.mxu0 0.0
  %194 = vmatpush1.msra.mxu0 0.0
  %195 = vmatprep.subr.mxu0 0.0
  %196 = vmatpush1.msra.mxu0 0.0
  %197 = vmatprep.subr.mxu0 0.0
  %198 = vmatpush1.msra.mxu0 0.0
  %199 = vmatprep.subr.mxu0 0.0
  %200 = vmatpush1.msra.mxu0 0.0
  %201 = vmatprep.subr.mxu0 0.0
  %202 = vmatpush1.msra.mxu0 0.0
  %203 = vmatprep.subr.mxu0 0.0
  %204 = vmatpush1.msra.mxu0 0.0
  %205 = vmatprep.subr.mxu0 0.0
  %206 = vmatpush1.msra.mxu0 0.0
  %207 = vmatprep.subr.mxu0 0.0
  %208 = vmatpush1.msra.mxu0 0.0
  %209 = vmatprep.subr.mxu0 0.0
  %210 = vmatpush1.msra.mxu0 0.0
  %211 = vmatprep.subr.mxu0 0.0
  %212 = vmatpush1.msra.mxu0 0.0
  %213 = vmatprep.subr.mxu0 0.0
  %214 = vmatpush1.msra.mxu0 0.0
  %215 = vmatprep.mubr.f32.mxu0 0.0
  %216 = vmatmul.mubr.f32.gmra.mrb[0].mxu0 %v127
  %v217 = vpop.f32.mrb[0].mxu0
  %v218 = vadd.f32 %v149, %v217
  %v219 = vpop.f32.mrb[0].mxu0
  %220 = vdwg.mxu0
  %v221 = vmax.f32 %v218, 0.0
  %v222 = vld [vmem:[%s6] sm:$0xff]
  %v223 = vld [vmem:[%s6 + $0x8] sm:$0xff]
  %v224 = vld [vmem:[%s6 + $0x10] sm:$0xff]
  %v225 = vld [vmem:[%s6 + $0x18] sm:$0xff]
  %v226 = vld [vmem:[%s6 + $0x20] sm:$0xff]
  %v227 = vld [vmem:[%s6 + $0x28] sm:$0xff]
  %v228 = vld [vmem:[%s6 + $0x30] sm:$0xff]
  %v229 = vld [vmem:[%s6 + $0x38] sm:$0xff]
  %v230 = vld [vmem:[%s6 + $0x40] sm:$0xff]
  %v231 = vld [vmem:[%s6 + $0x48] sm:$0xff]
  %v232 = vld [vmem:[%s6 + $0x50] sm:$0xff]
  %v233 = vld [vmem:[%s6 + $0x58] sm:$0xff]
  %v234 = vld [vmem:[%s6 + $0x60] sm:$0xff]
  %v235 = vld [vmem:[%s6 + $0x68] sm:$0xff]
  %v236 = vld [vmem:[%s6 + $0x70] sm:$0xff]
  %v237 = vld [vmem:[%s6 + $0x78] sm:$0xff]
  %v238 = vld [vmem:[%s7] sm:$0x1]
  %v240 = vlaneseq
  %v241 = vshrl.u32 %v240, 7
  %v242 = vsub.s32 0, %v241
  %v243 = vrot.slane %v238, %v242
  %245 = vmatprep.subr.mxu0 0.0
  %246 = vmatpush1.msra.mxu0 %v222
  %247 = vmatprep.subr.mxu0 0.0
  %248 = vmatpush1.msra.mxu0 %v223
  %249 = vmatprep.subr.mxu0 0.0
  %250 = vmatpush1.msra.mxu0 %v224
  %251 = vmatprep.subr.mxu0 0.0
  %252 = vmatpush1.msra.mxu0 %v225
  %253 = vmatprep.subr.mxu0 0.0
  %254 = vmatpush1.msra.mxu0 %v226
  %255 = vmatprep.subr.mxu0 0.0
  %256 = vmatpush1.msra.mxu0 %v227
  %257 = vmatprep.subr.mxu0 0.0
  %258 = vmatpush1.msra.mxu0 %v228
  %259 = vmatprep.subr.mxu0 0.0
  %260 = vmatpush1.msra.mxu0 %v229
  %261 = vmatprep.subr.mxu0 0.0
  %262 = vmatpush1.msra.mxu0 %v230
  %263 = vmatprep.subr.mxu0 0.0
  %264 = vmatpush1.msra.mxu0 %v231
  %265 = vmatprep.subr.mxu0 0.0
  %266 = vmatpush1.msra.mxu0 %v232
  %267 = vmatprep.subr.mxu0 0.0
  %268 = vmatpush1.msra.mxu0 %v233
  %269 = vmatprep.subr.mxu0 0.0
  %270 = vmatpush1.msra.mxu0 %v234
  %271 = vmatprep.subr.mxu0 0.0
  %272 = vmatpush1.msra.mxu0 %v235
  %273 = vmatprep.subr.mxu0 0.0
  %274 = vmatpush1.msra.mxu0 %v236
  %275 = vmatprep.subr.mxu0 0.0
  %276 = vmatpush1.msra.mxu0 %v237
  %277 = vmatprep.subr.mxu0 0.0
  %278 = vmatpush1.msra.mxu0 0.0
  %279 = vmatprep.subr.mxu0 0.0
  %280 = vmatpush1.msra.mxu0 0.0
  %281 = vmatprep.subr.mxu0 0.0
  %282 = vmatpush1.msra.mxu0 0.0
  %283 = vmatprep.subr.mxu0 0.0
  %284 = vmatpush1.msra.mxu0 0.0
  %285 = vmatprep.subr.mxu0 0.0
  %286 = vmatpush1.msra.mxu0 0.0
  %287 = vmatprep.subr.mxu0 0.0
  %288 = vmatpush1.msra.mxu0 0.0
  %289 = vmatprep.subr.mxu0 0.0
  %290 = vmatpush1.msra.mxu0 0.0
  %291 = vmatprep.subr.mxu0 0.0
  %292 = vmatpush1.msra.mxu0 0.0
  %293 = vmatprep.subr.mxu0 0.0
  %294 = vmatpush1.msra.mxu0 0.0
  %295 = vmatprep.subr.mxu0 0.0
  %296 = vmatpush1.msra.mxu0 0.0
  %297 = vmatprep.subr.mxu0 0.0
  %298 = vmatpush1.msra.mxu0 0.0
  %299 = vmatprep.subr.mxu0 0.0
  %300 = vmatpush1.msra.mxu0 0.0
  %301 = vmatprep.subr.mxu0 0.0
  %302 = vmatpush1.msra.mxu0 0.0
  %303 = vmatprep.subr.mxu0 0.0
  %304 = vmatpush1.msra.mxu0 0.0
  %305 = vmatprep.subr.mxu0 0.0
  %306 = vmatpush1.msra.mxu0 0.0
  %307 = vmatprep.subr.mxu0 0.0
  %308 = vmatpush1.msra.mxu0 0.0
  %309 = vmatprep.mubr.f32.mxu0 0.0
  %310 = vmatmul.mubr.f32.gmra.mrb[0].mxu0 %v221
  %v311 = vpop.f32.mrb[0].mxu0
  %v312 = vadd.f32 %v243, %v311
  %v313 = vpop.f32.mrb[0].mxu0
  %314 = vdwg.mxu0
  %315 = vst [vmem:[%s8] sm:$0xff] %v312
  // Predicated region
  $region34: #{d2e_net_mse.1} parent=0 // pred_check
    _
  $region35: #{d2e_net_mse.1} parent=0 // pred_check_branch
    %317 = sbr.rel (0) target = $region37
  $region36: #{d2e_net_mse.1} parent=0 // pred_region
    _
  $region37: #{d2e_net_mse.1} parent=0 // pred_fallthru
    _
  // Predicated region
  $region38: #{d2e_net_mse.1} parent=0 // pred_check
    _
  $region39: #{d2e_net_mse.1} parent=0 // pred_check_branch
    %319 = sbr.rel (0) target = $region41
  $region40: #{d2e_net_mse.1} parent=0 // pred_region
    _
  $region41: #{d2e_net_mse.1} parent=0 // pred_fallthru
    _

</llo_original>
